<compile_context>
chip_gen: v6e
topology: v6e:2x2x1
jax: 0.10.0
libtpu: 0.0.40
codegen_flags: <defaults>
</compile_context>

<pallas_src>
import functools

import jax
import jax.numpy as jnp
import numpy as np
from jax import lax
from jax.experimental import pallas as pl
from jax.experimental.pallas import tpu as pltpu


def _psd_kernel(seed_ref, x_ref, w_ref, o_ref, *, dropout_p, training, compute_dtype):
    x = x_ref[...]                      # (tile_m, K) f32
    tile_m, k = x.shape

    if training and dropout_p > 0.0:
        if dropout_p >= 1.0:
            x = jnp.zeros_like(x)
        else:
            # Stateless counter-based hash -> uniform uint32 per element.
            row = lax.broadcasted_iota(jnp.int32, (tile_m, k), 0)
            col = lax.broadcasted_iota(jnp.int32, (tile_m, k), 1)
            g_row = pl.program_id(0) * tile_m + row           # global row id
            idx = (g_row * k + col).astype(jnp.uint32)        # global element id
            h = idx + seed_ref[0].astype(jnp.uint32) * jnp.uint32(0x9E3779B9)
            h = h ^ (h >> 16)
            h = h * jnp.uint32(0x7FEB352D)
            h = h ^ (h >> 15)
            h = h * jnp.uint32(0x846CA68B)
            h = h ^ (h >> 16)
            # keep with probability (1 - p): integer threshold, no float convert.
            thr = jnp.uint32(min(int(round(dropout_p * 4294967296.0)), 4294967295))
            keep = h >= thr
            x = jnp.where(keep,
                          x * jnp.float32(1.0 / (1.0 - dropout_p)),
                          jnp.float32(0.0))

    o_ref[...] = jnp.dot(x.astype(compute_dtype),
                         w_ref[...].astype(compute_dtype),
                         preferred_element_type=jnp.float32)


def psd_forward(x, psd, *, dropout_p=0.5, training=False, seed=0,
                tile_m_cap=2048, compute_dtype=jnp.float32):
    """x: [..., in_channels] f32, psd: [in_channels, cloth_points*3] f32.

    Returns [..., cloth_points, 3] f32 (== dropout(x) @ psd, reshaped).
    """
    lead = x.shape[:-1]
    K = x.shape[-1]
    M = int(np.prod(lead)) if lead else 1
    N = psd.shape[1]

    # Lane-dense output: pad N up to a multiple of 128 (sliced off afterwards).
    N_pad = ((N + 127) // 128) * 128
    w = psd.astype(jnp.float32)
    if N_pad != N:
        w = jnp.pad(w, ((0, 0), (0, N_pad - N)))

    # Row tiling: whole (8-padded) M as one tile when small, capped tiles otherwise.
    M8 = max(8, -(-M // 8) * 8)
    if M8 <= tile_m_cap:
        tile_m = M8
        m_pad = M8
    else:
        tile_m = tile_m_cap
        m_pad = -(-M // tile_m) * tile_m

    x2 = x.reshape(M, K).astype(jnp.float32)
    if m_pad != M:
        x2 = jnp.pad(x2, ((0, m_pad - M), (0, 0)))

    seed_arr = jnp.asarray([seed], dtype=jnp.int32)
    kernel = functools.partial(_psd_kernel,
                               dropout_p=float(dropout_p),
                               training=bool(training),
                               compute_dtype=compute_dtype)

    out = pl.pallas_call(
        kernel,
        out_shape=jax.ShapeDtypeStruct((m_pad, N_pad), jnp.float32),
        grid=(m_pad // tile_m,),
        in_specs=[
            pl.BlockSpec(memory_space=pltpu.MemorySpace.SMEM),   # seed scalar
            pl.BlockSpec((tile_m, K), lambda i: (i, 0)),         # x row tile
            pl.BlockSpec((K, N_pad), lambda i: (0, 0)),          # resident weight
        ],
        out_specs=pl.BlockSpec((tile_m, N_pad), lambda i: (i, 0)),
        compiler_params=pltpu.CompilerParams(
            dimension_semantics=("parallel",)),
    )(seed_arr, x2, w)

    out = out[:M, :N]
    return out.reshape(*lead, N // 3, 3)


def init_psd_param(key, in_channels, cloth_points):
    # nn.init.xavier_normal_: std = sqrt(2 / (fan_in + fan_out))
    n_out = cloth_points * 3
    std = float(np.sqrt(2.0 / (in_channels + n_out)))
    return jax.random.normal(key, (in_channels, n_out), dtype=jnp.float32) * std


if __name__ == "__main__":
    key = jax.random.PRNGKey(0)
    k_x, k_w = jax.random.split(key)

    batch, seq, in_channels = 2, 8, 32
    cloth_points = 40  # cloth_shape[0]

    x = jax.random.normal(k_x, (batch, seq, in_channels), dtype=jnp.float32)
    psd = init_psd_param(k_w, in_channels, cloth_points)

    # Eval mode (dropout = identity): must match the pure-JAX reference.
    out = psd_forward(x, psd, dropout_p=0.5, training=False)
    out = jax.block_until_ready(out)
    ref = jnp.matmul(x, psd).reshape(batch, seq, cloth_points, 3)
    np.testing.assert_allclose(np.asarray(out), np.asarray(ref), rtol=1e-5, atol=1e-5)
    assert out.shape == (batch, seq, cloth_points, 3)

    # Training mode: in-kernel stochastic (inverted) dropout.
    out_train = psd_forward(x, psd, dropout_p=0.5, training=True, seed=123)
    out_train = jax.block_until_ready(out_train)
    assert out_train.shape == (batch, seq, cloth_points, 3)
    assert np.all(np.isfinite(np.asarray(out_train)))
    # Dropout must perturb the output (even an all-keep mask would scale by 2x).
    assert not np.allclose(np.asarray(out_train), np.asarray(ref))

    print("KERNEL_OK")
</pallas_src>

<mosaic_0001>
module attributes {stable_mosaic.version = 11 : i64} {
  func.func @_psd_kernel(%arg0: i32, %arg1: memref<1xi32, #tpu.memory_space<smem>>, %arg2: memref<16x32xf32, #tpu.memory_space<vmem>>, %arg3: memref<32x128xf32, #tpu.memory_space<vmem>>, %arg4: memref<16x128xf32, #tpu.memory_space<vmem>>) attributes {dimension_semantics = [#tpu.dimension_semantics<parallel>], iteration_bounds = array<i64: 1>, scalar_prefetch = 0 : i64, scratch_operands = 0 : i64, tpu.core_type = #tpu.core_type<tc>, window_params = [{transform_indices = @transform_0, window_bounds = array<i64: 1>}, {transform_indices = @transform_1, window_bounds = array<i64: 16, 32>}, {pipeline_mode = #tpu.pipeline_mode<synchronous>, transform_indices = @transform_2, window_bounds = array<i64: 32, 128>}, {transform_indices = @transform_3, window_bounds = array<i64: 16, 128>}]} {
    %c0 = arith.constant 0 : index
    %c0_0 = arith.constant 0 : index
    %0 = vector.load %arg2[%c0, %c0_0] : memref<16x32xf32, #tpu.memory_space<vmem>>, vector<16x32xf32>
    %c0_1 = arith.constant 0 : index
    %c0_2 = arith.constant 0 : index
    %1 = vector.load %arg3[%c0_1, %c0_2] : memref<32x128xf32, #tpu.memory_space<vmem>>, vector<32x128xf32>
    %cst = arith.constant dense<0.000000e+00> : vector<16x128xf32>
    %2 = tpu.matmul %0, %1, %cst {dimension_numbers = #tpu.dot_dimension_numbers<[1], [0], [0], [1], [0, 0, 1, 1], [], []>} : vector<16x32xf32>, vector<32x128xf32>, vector<16x128xf32> -> vector<16x128xf32>
    %c0_3 = arith.constant 0 : index
    %c0_4 = arith.constant 0 : index
    %3 = vector.load %arg4[%c0_3, %c0_4] : memref<16x128xf32, #tpu.memory_space<vmem>>, vector<16x128xf32>
    tpu.vector_store %arg4[%c0_3, %c0_4], %2 {strides = array<i32>} : memref<16x128xf32, #tpu.memory_space<vmem>>, vector<16x128xf32>,
    return
  }
  func.func @transform_0(%arg0: i32) -> i32 {
    %c0_i32 = arith.constant 0 : i32
    %c0_i32_0 = arith.constant 0 : i32
    return %c0_i32 : i32
  }
  func.func @transform_1(%arg0: i32) -> (i32, i32) {
    %c0_i32 = arith.constant 0 : i32
    %c0_i32_0 = arith.constant 0 : i32
    return %arg0, %c0_i32 : i32, i32
  }
  func.func @transform_2(%arg0: i32) -> (i32, i32) {
    %c0_i32 = arith.constant 0 : i32
    %c0_i32_0 = arith.constant 0 : i32
    %c0_i32_1 = arith.constant 0 : i32
    return %c0_i32, %c0_i32_0 : i32, i32
  }
  func.func @transform_3(%arg0: i32) -> (i32, i32) {
    %c0_i32 = arith.constant 0 : i32
    %c0_i32_0 = arith.constant 0 : i32
    return %arg0, %c0_i32 : i32, i32
  }
}

</mosaic_0001>

<llo_original>
// kernel: tpu_custom_call.1
$region0: #{tpu_custom_call.1}
  #allocation0 [shape = 'u32[]', space=smem, size = 0x4, offset = 0x4, fixed_abs, tag = 'smem constant byte address 0x4 - core index']
  #allocation1 [shape = 'u32[144,128]{1,0:T(1,128)}', space=vmem, size = 0x12000, scoped, tag = 'internal scratch']
  #allocation2 [shape = 's32[1]{0:T(128)S(6)}', space=smem, size = 0x200, scoped, tag = 'scoped memory for tpu_custom_call.1']
  %s0 = inlined_call_operand.<no memory space> [shape: s32[1], index: 0, kind: input, shape index: {}]
  %s1 = inlined_call_operand.hbm [shape: f32[16,32], index: 1, kind: input, shape index: {}]
  %s2 = inlined_call_operand.hbm [shape: f32[32,128], index: 2, kind: input, shape index: {}]
  %s3 = inlined_call_operand.hbm [shape: f32[16,128], index: 3, kind: output, shape index: {}]
  %s4 = sld [smem:[#allocation0]]
  $region30: #{tpu_custom_call.1} parent=0
    _
  %s6 = ssub.s32 1, %s4
  %s7 = scalar_select 0, %s6, %s4
  %8 = sst [smem:[#allocation2]] %s0
  $region1: #{tpu_custom_call.1} parent=0
    #allocation3 [shape = 'u8[8192]{0}', space=vmem, size = 0x2000, scoped, tag = 'input window, operand 1, single buffered']
    #allocation4 [shape = 's32[1]{0}', space=sflag, size = 0x4, scoped, tag = 'scoped memory for tpu_custom_call.1']
    #allocation5 [shape = 's32[1]{0}', space=sflag, size = 0x4, scoped, tag = 'scoped memory for tpu_custom_call.1']
    #allocation6 [shape = 'u8[16384]{0}', space=vmem, size = 0x4000, scoped, tag = 'input window, operand 2, single buffered']
    #allocation7 [shape = 's32[1]{0}', space=sflag, size = 0x4, scoped, tag = 'scoped memory for tpu_custom_call.1']
    #allocation8 [shape = 'u8[8192]{0}', space=vmem, size = 0x2000, scoped, tag = 'output window, operand 0, single buffered']
    %9 = vsyncpa [#allocation4], 0
    %10 = vsyncpa [#allocation7], 0
    %11 = vsyncpa [#allocation5], 0
    // Predicated region
    $region2: #{tpu_custom_call.1} parent=1 // pred_check
      _
    $region3: #{tpu_custom_call.1} parent=1 // pred_check_branch
      %13 = sbr.rel (0) target = $region5
    $region4: #{tpu_custom_call.1} parent=1 // pred_region
      _
    $region5: #{tpu_custom_call.1} parent=1 // pred_fallthru
      _
    // Predicated region
    $region6: #{tpu_custom_call.1} parent=1 // pred_check
      _
    $region7: #{tpu_custom_call.1} parent=1 // pred_check_branch
      %15 = sbr.rel (0) target = $region9
    $region8: #{tpu_custom_call.1} parent=1 // pred_region
      %s17 = ssub.s32 256, 256
      %18 = vsyncadd [#allocation4], %s17
      %s19 = sshll.u32 [#allocation3], 4
      %s20 = int_to_ptr.vmem [resolvable:$true] %s19
      %25 = dma.hbm_to_vmem [thread:$0]  %s1, 256, %s20, [#allocation4], 128, 128, 8
    $region9: #{tpu_custom_call.1} parent=1 // pred_fallthru
      _
    // Predicated region
    $region10: #{tpu_custom_call.1} parent=1 // pred_check
      _
    $region11: #{tpu_custom_call.1} parent=1 // pred_check_branch
      %27 = sbr.rel (0) target = $region13
    $region12: #{tpu_custom_call.1} parent=1 // pred_region
      %s29 = ssub.s32 512, 512
      %30 = vsyncadd [#allocation7], %s29
      %s31 = sshll.u32 [#allocation6], 4
      %s32 = int_to_ptr.vmem [resolvable:$true] %s31
      %37 = dma.hbm_to_vmem [thread:$0]  %s2, 512, %s32, [#allocation7], 128, 128, 8
    $region13: #{tpu_custom_call.1} parent=1 // pred_fallthru
      _
    // Predicated region
    $region14: #{tpu_custom_call.1} parent=1 // pred_check
      _
    $region15: #{tpu_custom_call.1} parent=1 // pred_check_branch
      %39 = sbr.rel (0) target = $region17
    $region16: #{tpu_custom_call.1} parent=1 // pred_region
      %40 = dma.done [#allocation4], 256
    $region17: #{tpu_custom_call.1} parent=1 // pred_fallthru
      _
    // Predicated region
    $region18: #{tpu_custom_call.1} parent=1 // pred_check
      _
    $region19: #{tpu_custom_call.1} parent=1 // pred_check_branch
      %42 = sbr.rel (0) target = $region21
    $region20: #{tpu_custom_call.1} parent=1 // pred_region
      %43 = dma.done [#allocation7], 512
    $region21: #{tpu_custom_call.1} parent=1 // pred_fallthru
      _
    %v44 = vld [vmem:[#allocation3] sm:$0xff]
    %v45 = vld [vmem:[#allocation3 + $0x8] sm:$0xff]
    %v46 = vld [vmem:[#allocation6] sm:$0xff]
    %v47 = vld [vmem:[#allocation6 + $0x8] sm:$0xff]
    %v48 = vld [vmem:[#allocation6 + $0x10] sm:$0xff]
    %v49 = vld [vmem:[#allocation6 + $0x18] sm:$0xff]
    %vm50 = vcmask 261120
    %v52 = vsel %vm50, %v44, 0
    %v55 = vsel %vm50, %v45, 0
    %57 = vmatprep.subr.mxu0 0.0
    %58 = vmatpush1.msra.mxu0 0.0
    %59 = vmatprep.subr.mxu0 0.0
    %60 = vmatpush1.msra.mxu0 0.0
    %61 = vmatprep.subr.mxu0 0.0
    %62 = vmatpush1.msra.mxu0 0.0
    %63 = vmatprep.subr.mxu0 0.0
    %64 = vmatpush1.msra.mxu0 0.0
    %65 = vmatprep.subr.mxu0 0.0
    %66 = vmatpush1.msra.mxu0 0.0
    %67 = vmatprep.subr.mxu0 0.0
    %68 = vmatpush1.msra.mxu0 0.0
    %69 = vmatprep.subr.mxu0 0.0
    %70 = vmatpush1.msra.mxu0 0.0
    %71 = vmatprep.subr.mxu0 0.0
    %72 = vmatpush1.msra.mxu0 0.0
    %73 = vmatprep.subr.mxu0 0.0
    %74 = vmatpush1.msra.mxu0 0.0
    %75 = vmatprep.subr.mxu0 0.0
    %76 = vmatpush1.msra.mxu0 0.0
    %77 = vmatprep.subr.mxu0 0.0
    %78 = vmatpush1.msra.mxu0 0.0
    %79 = vmatprep.subr.mxu0 0.0
    %80 = vmatpush1.msra.mxu0 0.0
    %81 = vmatprep.subr.mxu0 0.0
    %82 = vmatpush1.msra.mxu0 %v49
    %83 = vmatprep.subr.mxu0 0.0
    %84 = vmatpush1.msra.mxu0 %v48
    %85 = vmatprep.subr.mxu0 0.0
    %86 = vmatpush1.msra.mxu0 %v47
    %87 = vmatprep.subr.mxu0 0.0
    %88 = vmatpush1.msra.mxu0 %v46
    %89 = vmatprep.subr.mxu0 0.0
    %90 = vmatpush2.msra.mxu0 0.0
    %91 = vmatprep.subr.mxu0 0.0
    %92 = vmatpush2.msra.mxu0 0.0
    %93 = vmatprep.subr.mxu0 0.0
    %94 = vmatpush2.msra.mxu0 0.0
    %95 = vmatprep.subr.mxu0 0.0
    %96 = vmatpush2.msra.mxu0 0.0
    %97 = vmatprep.subr.mxu0 0.0
    %98 = vmatpush2.msra.mxu0 0.0
    %99 = vmatprep.subr.mxu0 0.0
    %100 = vmatpush2.msra.mxu0 0.0
    %101 = vmatprep.subr.mxu0 0.0
    %102 = vmatpush2.msra.mxu0 0.0
    %103 = vmatprep.subr.mxu0 0.0
    %104 = vmatpush2.msra.mxu0 0.0
    %105 = vmatprep.subr.mxu0 0.0
    %106 = vmatpush2.msra.mxu0 0.0
    %107 = vmatprep.subr.mxu0 0.0
    %108 = vmatpush2.msra.mxu0 0.0
    %109 = vmatprep.subr.mxu0 0.0
    %110 = vmatpush2.msra.mxu0 0.0
    %111 = vmatprep.subr.mxu0 0.0
    %112 = vmatpush2.msra.mxu0 0.0
    %113 = vmatprep.subr.mxu0 0.0
    %114 = vmatpush2.msra.mxu0 0.0
    %115 = vmatprep.subr.mxu0 0.0
    %116 = vmatpush2.msra.mxu0 0.0
    %117 = vmatprep.subr.mxu0 0.0
    %118 = vmatpush2.msra.mxu0 0.0
    %119 = vmatprep.subr.mxu0 0.0
    %120 = vmatpush2.msra.mxu0 0.0
    %121 = vmatprep.mubr.f32.mxu0 0.0
    %122 = vmatmul.mubr.f32.gmra.mxu0 %v52
    %v123 = vpop.f32.mrf.mxu0
    %v124 = vadd.f32 0.0, %v123
    %v125 = vpop.f32.mrf.mxu0
    %126 = vmatprep.mubr.f32.mxu0 0.0
    %127 = vmatmul.mubr.f32.gmra.mxu0 %v55
    %v128 = vpop.f32.mrf.mxu0
    %v129 = vadd.f32 0.0, %v128
    %v130 = vpop.f32.mrf.mxu0
    %131 = vdwg.mxu0
    %132 = vst [vmem:[#allocation8] sm:$0xff] %v124
    %133 = vst [vmem:[#allocation8 + $0x8] sm:$0xff] %v129
    // Predicated region
    $region22: #{tpu_custom_call.1} parent=1 // pred_check
      _
    $region23: #{tpu_custom_call.1} parent=1 // pred_check_branch
      %135 = sbr.rel (0) target = $region25
    $region24: #{tpu_custom_call.1} parent=1 // pred_region
      %s137 = ssub.s32 256, 256
      %138 = vsyncadd [#allocation5], %s137
      %s139 = sshll.u32 [#allocation8], 4
      %s140 = int_to_ptr.vmem [resolvable:$true] %s139
      %145 = dma.vmem_to_hbm [thread:$0]  %s140, 256, %s3, [#allocation5], 128, 128, 8
    $region25: #{tpu_custom_call.1} parent=1 // pred_fallthru
      _
    // Predicated region
    $region26: #{tpu_custom_call.1} parent=1 // pred_check
      _
    $region27: #{tpu_custom_call.1} parent=1 // pred_check_branch
      %147 = sbr.rel (0) target = $region29
    $region28: #{tpu_custom_call.1} parent=1 // pred_region
      %148 = dma.done [#allocation5], 256
    $region29: #{tpu_custom_call.1} parent=1 // pred_fallthru
      _
    %149 = vsyncpa [#allocation4], 1
    %150 = vsyncpa [#allocation7], 1
    %151 = vsyncpa [#allocation5], 1

</llo_original>
